<compile_context>
chip_gen: v6e
topology: v6e:2x2x1
jax: 0.10.0
libtpu: 0.0.40
codegen_flags: <defaults>
</compile_context>

<pallas_src>
import numpy as np

import jax
import jax.numpy as jnp
from jax.experimental import pallas as pl
from jax.experimental.pallas import tpu as pltpu

BN_EPS = 1e-5
LANE = 128  # folded batch*length lane width (zero padded); one vreg lane span

# Synthetic stand-in for the external HCV_Num_Possible_Values dict.
HCV_NUM_POSSIBLE_VALUES = {"hcv_a": 6, "hcv_b": 4, "hcv_c": 9}


# --------------------------------------------------------------------------- utilities
def _round_up(x, m):
    return (x + m - 1) // m * m


class _ConstBuilder:
    """Packs all kernel constants into one (R, 128) f32 buffer (rows padded to 8)."""

    def __init__(self):
        self._chunks, self.offsets, self._cursor = [], {}, 0

    def add(self, name, arr):
        arr = np.asarray(arr, np.float32)
        r, c = arr.shape
        assert c <= LANE, (name, arr.shape)
        rp = _round_up(r, 8)
        buf = np.zeros((rp, LANE), np.float32)
        buf[:r, :c] = arr
        self.offsets[name] = self._cursor
        self._chunks.append(buf)
        self._cursor += rp

    def finalize(self):
        return np.concatenate(self._chunks, axis=0)


def _fold_bn(w, b, bn):
    """Fold inference-mode BatchNorm1d into the preceding Conv1d (numpy)."""
    gamma, beta, mean, var = (np.asarray(a, np.float32) for a in bn)
    w = np.asarray(w, np.float32)
    b = np.asarray(b, np.float32)
    scale = gamma / np.sqrt(var + BN_EPS)
    return w * scale[:, None, None], (b - mean) * scale + beta


def _stack_taps(w):
    """(Cout, Cin, K) torch conv weight -> (Cout, K*Cin) tap-major stacked weight."""
    cout, cin, k = w.shape
    return np.transpose(w, (0, 2, 1)).reshape(cout, k * cin)


def _bias_cols(b, ncols):
    """Per-channel bias pre-broadcast into the first `ncols` lanes, zero elsewhere."""
    out = np.zeros((np.asarray(b).shape[0], LANE), np.float32)
    out[:, :ncols] = np.asarray(b, np.float32)[:, None]
    return out


def _edge_mask(cin, k_taps, pad, length, batch):
    """mask[k*cin+c, g] = 1 iff output lane g (batch-folded) has a valid tap-k source."""
    m = np.zeros((k_taps * cin, LANE), np.float32)
    for k in range(k_taps):
        for g in range(batch * length):
            j = g % length
            if 0 <= j + k - pad < length:
                m[k * cin:(k + 1) * cin, g] = 1.0
    return m


def _stride_select(lin, lout, batch):
    """S[b*lin + 2j, b*lout + j] = 1: stride-2 output-column selection (block-diagonal)."""
    s = np.zeros((LANE, LANE), np.float32)
    for b in range(batch):
        for j in range(lout):
            s[b * lin + 2 * j, b * lout + j] = 1.0
    return s


def _pool_matrix(lf, batch):
    """P[b*lf + j, b] = 1/lf: per-batch mean pool (AdaptiveAvgPool1d(1)) as a matmul."""
    p = np.zeros((LANE, LANE), np.float32)
    for b in range(batch):
        p[b * lf:(b + 1) * lf, b] = 1.0 / lf
    return p


def _probe_roll_sign():
    """Empirically pin down pltpu.roll's rotation direction (one tiny pallas_call)."""

    def _k(x_ref, o_ref):
        o_ref[...] = pltpu.roll(x_ref[...], 1, 1)

    x = jnp.broadcast_to(jnp.arange(LANE, dtype=jnp.float32), (8, LANE))
    y = pl.pallas_call(_k, out_shape=jax.ShapeDtypeStruct((8, LANE), jnp.float32))(x)
    v = int(y[0, 0])
    if v == LANE - 1:   # np.roll convention: out[g] = in[g - shift]  -> shift = -delta
        return -1
    if v == 1:          # opposite convention: out[g] = in[g + shift] -> shift = +delta
        return 1
    raise RuntimeError(f"unexpected pltpu.roll semantics (probe value {v})")


# --------------------------------------------------------------------------- kernel
def _make_kernel(meta):
    off = meta["off"]
    blocks = meta["blocks"]
    C0, c_last = meta["C0"], meta["c_last"]
    ncls_pad = meta["ncls_pad"]
    sign = meta["shift_sign"]

    def _shifted(x, delta):
        # Returns x shifted so column g holds x[:, g + delta] (wraparound masked later).
        s = (sign * delta) % LANE
        return x if s == 0 else pltpu.roll(x, s, 1)

    def _conv_same(c_ref, x, i, which, cin):
        # 5-tap same-length Conv1d (+folded BN) as ONE stacked MXU matmul.
        parts = [_shifted(x, k - 2) for k in range(5)]
        m_off = off[f"m5_{i}"]
        xs = jnp.concatenate(parts, axis=0) * c_ref[m_off:m_off + 5 * cin, :]
        w_off, b_off = off[f"w{which}_{i}"], off[f"b{which}_{i}"]
        w = c_ref[w_off:w_off + cin, 0:5 * cin]
        b = c_ref[b_off:b_off + cin, :]
        return jnp.dot(w, xs, preferred_element_type=jnp.float32) + b

    def kernel(enc_ref, nume_ref, c_ref, out_ref):
        # Encoder: (cate-mean + demo, computed in glue) + Conv1d(10->C0, k=1, no bias).
        nin = nume_ref.shape[0]
        wn = c_ref[off["w_nume"]:off["w_nume"] + C0, 0:nin]
        h = enc_ref[...] + jnp.dot(wn, nume_ref[...], preferred_element_type=jnp.float32)

        for i, blk in enumerate(blocks):
            cin, cout = blk["cin"], blk["cout"]
            # BasicBlock: conv5x1+BN+ReLU, (Dropout=id), conv5x1+BN, +identity, ReLU.
            identity = h
            y = jnp.maximum(_conv_same(c_ref, h, i, 1, cin), 0.0)
            y = _conv_same(c_ref, y, i, 2, cin)
            h = jnp.maximum(y + identity, 0.0)
            # Downsample: Conv1d(cin, cout, 3, stride=2) + BN + ReLU (+ Dropout=id).
            # Rolled tap stack -> stride-selection matmul -> stacked-weight matmul.
            parts = [_shifted(h, k) for k in range(3)]
            xs = jnp.concatenate(parts, axis=0)
            s_off = off[f"sel_{i}"]
            xs = jnp.dot(xs, c_ref[s_off:s_off + LANE, :],
                         preferred_element_type=jnp.float32)
            wd = c_ref[off[f"wd_{i}"]:off[f"wd_{i}"] + cout, 0:3 * cin]
            bd = c_ref[off[f"bd_{i}"]:off[f"bd_{i}"] + cout, :]
            h = jnp.maximum(jnp.dot(wd, xs, preferred_element_type=jnp.float32) + bd, 0.0)

        # Head: AdaptiveAvgPool1d(1) as a pooling-selector matmul + Linear -> (8, 128)
        # lane-dense padded logits tile (classes on sublanes, batch in leading lanes).
        p_off = off["pool"]
        pooled = jnp.dot(h, c_ref[p_off:p_off + LANE, :],
                         preferred_element_type=jnp.float32)          # (c_last, LANE)
        wfc = c_ref[off["w_fc"]:off["w_fc"] + ncls_pad, 0:c_last]
        bfc = c_ref[off["b_fc"]:off["b_fc"] + ncls_pad, :]
        out_ref[...] = jnp.dot(wfc, pooled, preferred_element_type=jnp.float32) + bfc

    return kernel


# --------------------------------------------------------------------------- wrapper
def build_forward(prep):
    meta = prep["meta"]
    B, L, C0 = meta["batch"], meta["seq_len"], meta["C0"]
    ncls, ncls_pad = meta["numclass"], meta["ncls_pad"]

    kernel = _make_kernel(meta)
    vmem = pl.BlockSpec(memory_space=pltpu.MemorySpace.VMEM)   # whole-array VMEM blocks
    call = pl.pallas_call(
        kernel,
        out_shape=jax.ShapeDtypeStruct((ncls_pad, LANE), jnp.float32),
        in_specs=[vmem, vmem, vmem],
        out_specs=vmem,
    )

    emb_all = prep["emb_all"]
    emb_off = prep["emb_offsets"]
    w_demo = prep["w_demo"]
    consts = prep["consts"]

    def forward(cate, nume, demo):
        # XLA glue: single embedding gather + demo Linear, emitted in the folded
        # (C, B*L) lane layout the kernel expects.  Dropout = identity (inference).
        ids = cate + emb_off[None, :, None]                       # (B, F, L)
        x_cate = jnp.mean(jnp.take(emb_all, ids, axis=0), axis=1)  # (B, L, C0)
        enc = x_cate + (demo @ w_demo.T)[:, None, :]               # (B, L, C0)
        enc_f = jnp.pad(jnp.transpose(enc, (2, 0, 1)).reshape(C0, B * L),
                        ((0, 0), (0, LANE - B * L)))
        nume_f = jnp.pad(jnp.transpose(nume, (1, 0, 2)).reshape(nume.shape[1], B * L),
                         ((0, 0), (0, LANE - B * L)))
        out = call(enc_f, nume_f, consts)                          # (ncls_pad, LANE)
        return out[:ncls, :B].T                                    # (B, numclass)

    return forward


# --------------------------------------------------------------------------- params
def prepare_params(params, seq_len, batch):
    """One-off prep: BN folding, stacked tap-major weights, pre-broadcast biases,
    edge masks, stride/pooling selection matrices — all packed into one constants
    buffer — plus the concatenated embedding table for the single-gather glue."""
    assert batch * seq_len <= LANE
    cb = _ConstBuilder()
    C0 = params["w_nume"].shape[0]
    cb.add("w_nume", np.asarray(params["w_nume"]))

    blocks_meta = []
    li = seq_len
    for i, blk in enumerate(params["blocks"]):
        w1, b1 = _fold_bn(blk["conv1_w"], blk["conv1_b"], blk["bn1"])
        w2, b2 = _fold_bn(blk["conv2_w"], blk["conv2_b"], blk["bn2"])
        wd, bd = _fold_bn(blk["down_w"], blk["down_b"], blk["bn3"])
        cin, cout = w1.shape[0], wd.shape[0]
        lo = (li - 3) // 2 + 1

        cb.add(f"w1_{i}", _stack_taps(w1))
        cb.add(f"b1_{i}", _bias_cols(b1, batch * li))
        cb.add(f"w2_{i}", _stack_taps(w2))
        cb.add(f"b2_{i}", _bias_cols(b2, batch * li))
        cb.add(f"m5_{i}", _edge_mask(cin, 5, 2, li, batch))
        cb.add(f"wd_{i}", _stack_taps(wd))
        cb.add(f"bd_{i}", _bias_cols(bd, batch * lo))
        cb.add(f"sel_{i}", _stride_select(li, lo, batch))
        blocks_meta.append(dict(cin=cin, cout=cout))
        li = lo

    ncls, c_last = params["w_fc"].shape
    ncls_pad = _round_up(ncls, 8)
    wfc = np.zeros((ncls_pad, c_last), np.float32)
    wfc[:ncls] = np.asarray(params["w_fc"], np.float32)
    bfc = np.zeros((ncls_pad,), np.float32)
    bfc[:ncls] = np.asarray(params["b_fc"], np.float32)
    cb.add("w_fc", wfc)
    cb.add("b_fc", _bias_cols(bfc, batch))
    cb.add("pool", _pool_matrix(li, batch))

    meta = dict(blocks=blocks_meta, off=cb.offsets, C0=C0, c_last=c_last,
                numclass=ncls, ncls_pad=ncls_pad, batch=batch, seq_len=seq_len,
                shift_sign=_probe_roll_sign())

    vocabs = [int(e.shape[0]) for e in params["emb"]]
    emb_offsets = np.cumsum([0] + vocabs)[:-1].astype(np.int32)
    return dict(consts=jnp.asarray(cb.finalize()),
                emb_all=jnp.concatenate([jnp.asarray(e) for e in params["emb"]], axis=0),
                emb_offsets=jnp.asarray(emb_offsets),
                w_demo=jnp.asarray(params["w_demo"]),
                meta=meta)


def _normal(key, shape, std):
    return std * jax.random.normal(key, shape, jnp.float32)


def init_params(key, ch_list, numclass):
    C0 = ch_list[0]
    keys = iter(jax.random.split(key, 64))
    params = {}

    # CateEncoder: one Embedding(vocab, C0) per categorical feature (xavier_uniform).
    embs = []
    for vocab in HCV_NUM_POSSIBLE_VALUES.values():
        bound = (6.0 / (vocab + C0)) ** 0.5
        embs.append(jax.random.uniform(next(keys), (vocab, C0), jnp.float32, -bound, bound))
    params["emb"] = embs

    # nume_encoder: Conv1d(10, C0, 1, bias=False); demo_encoder: Linear(4, C0, bias=False)
    params["w_nume"] = _normal(next(keys), (C0, 10), (2.0 / C0) ** 0.5)
    params["w_demo"] = _normal(next(keys), (C0, 4), 0.5)

    blocks = []
    for i in range(len(ch_list) - 1):
        cin, cout = ch_list[i], ch_list[i + 1]
        blk = {
            "conv1_w": _normal(next(keys), (cin, cin, 5), (2.0 / (cin * 5)) ** 0.5),
            "conv1_b": 0.1 * jax.random.normal(next(keys), (cin,), jnp.float32),
            "conv2_w": _normal(next(keys), (cin, cin, 5), (2.0 / (cin * 5)) ** 0.5),
            "conv2_b": 0.1 * jax.random.normal(next(keys), (cin,), jnp.float32),
            "down_w": _normal(next(keys), (cout, cin, 3), (2.0 / (cout * 3)) ** 0.5),
            "down_b": 0.1 * jax.random.normal(next(keys), (cout,), jnp.float32),
        }
        # BatchNorm1d params: (gamma, beta, running_mean, running_var).  gamma/beta match
        # the module's reset (1/0); running stats are randomized so BN folding is exercised.
        for name, ch in (("bn1", cin), ("bn2", cin), ("bn3", cout)):
            blk[name] = (jnp.ones((ch,), jnp.float32),
                         jnp.zeros((ch,), jnp.float32),
                         0.1 * jax.random.normal(next(keys), (ch,), jnp.float32),
                         1.0 + 0.1 * jax.random.uniform(next(keys), (ch,), jnp.float32))
        blocks.append(blk)
    params["blocks"] = blocks

    bound = (1.0 / ch_list[-1]) ** 0.5
    params["w_fc"] = jax.random.uniform(next(keys), (numclass, ch_list[-1]), jnp.float32,
                                        -bound, bound)
    params["b_fc"] = jax.random.uniform(next(keys), (numclass,), jnp.float32, -bound, bound)
    return params


# --------------------------------------------------------------------------- reference
def reference_forward(params, cate, nume, demo):
    """Pure-JAX (XLA) reference matching the PyTorch module in inference mode."""
    parts = [jnp.take(w, cate[:, i, :], axis=0) for i, w in enumerate(params["emb"])]
    x_cate = jnp.transpose(sum(parts) / len(parts), (0, 2, 1))          # (B, C0, L)
    x_nume = jnp.einsum("co,bol->bcl", params["w_nume"], nume)
    x_demo = (demo @ params["w_demo"].T)[:, :, None]
    h = x_cate + x_nume + x_demo

    def bn(x, p):
        g, b, m, v = p
        return (x - m[None, :, None]) * (g / jnp.sqrt(v + BN_EPS))[None, :, None] \
            + b[None, :, None]

    def conv1d(x, w, b, stride, pad):
        y = jax.lax.conv_general_dilated(x, w, (stride,), [(pad, pad)],
                                         dimension_numbers=("NCH", "OIH", "NCH"))
        return y + b[None, :, None]

    for blk in params["blocks"]:
        identity = h
        y = jax.nn.relu(bn(conv1d(h, blk["conv1_w"], blk["conv1_b"], 1, 2), blk["bn1"]))
        y = bn(conv1d(y, blk["conv2_w"], blk["conv2_b"], 1, 2), blk["bn2"])
        h = jax.nn.relu(y + identity)
        h = jax.nn.relu(bn(conv1d(h, blk["down_w"], blk["down_b"], 2, 0), blk["bn3"]))
    pooled = jnp.mean(h, axis=2)
    return pooled @ params["w_fc"].T + params["b_fc"]


# --------------------------------------------------------------------------- main
if __name__ == "__main__":
    key = jax.random.PRNGKey(0)
    ch_list = [8, 16, 32]
    numclass = 5
    B, L = 2, 16

    kp, kc, kn, kd = jax.random.split(key, 4)
    params = init_params(kp, ch_list, numclass)
    prep = prepare_params(params, seq_len=L, batch=B)       # one-off: fold + pack consts
    forward = jax.jit(build_forward(prep))

    vocabs = list(HCV_NUM_POSSIBLE_VALUES.values())
    cate = jnp.concatenate(
        [jax.random.randint(jax.random.fold_in(kc, i), (B, 1, L), 0, v)
         for i, v in enumerate(vocabs)],
        axis=1).astype(jnp.int32)                           # (B, 3, L)
    nume = jax.random.normal(kn, (B, 10, L), jnp.float32)   # (B, 10, L)
    demo = jax.random.normal(kd, (B, 4), jnp.float32)       # (B, 4)

    out = jax.block_until_ready(forward(cate, nume, demo))
    assert out.shape == (B, numclass), out.shape
    assert bool(jnp.all(jnp.isfinite(out)))

    ref = jax.block_until_ready(reference_forward(params, cate, nume, demo))
    err = float(jnp.max(jnp.abs(out - ref)))
    assert err < 1e-3, f"kernel mismatch vs pure-JAX reference: max abs err = {err}"
    print("KERNEL_OK")
</pallas_src>

<mosaic_0001>
module attributes {stable_mosaic.version = 11 : i64} {
  func.func @_k(%arg0: memref<8x128xf32, #tpu.memory_space<vmem>>, %arg1: memref<8x128xf32, #tpu.memory_space<vmem>>) attributes {dimension_semantics = [], scalar_prefetch = 0 : i64, scratch_operands = 0 : i64, tpu.core_type = #tpu.core_type<tc>} {
    %c0 = arith.constant 0 : index
    %c0_0 = arith.constant 0 : index
    %0 = vector.load %arg0[%c0, %c0_0] : memref<8x128xf32, #tpu.memory_space<vmem>>, vector<8x128xf32>
    %c1_i32 = arith.constant 1 : i32
    %1 = tpu.dynamic_rotate %0 by %c1_i32 dim 1 : vector<8x128xf32>, i32 -> vector<8x128xf32>
    %c0_1 = arith.constant 0 : index
    %c0_2 = arith.constant 0 : index
    %2 = vector.load %arg1[%c0_1, %c0_2] : memref<8x128xf32, #tpu.memory_space<vmem>>, vector<8x128xf32>
    tpu.vector_store %arg1[%c0_1, %c0_2], %1 {strides = array<i32>} : memref<8x128xf32, #tpu.memory_space<vmem>>, vector<8x128xf32>,
    return
  }
}

</mosaic_0001>

<llo_original>
// kernel: tpu_custom_call.1
$region0: #{tpu_custom_call.1}
  #allocation0 [shape = 'u32[]', space=smem, size = 0x4, offset = 0x4, fixed_abs, tag = 'smem constant byte address 0x4 - core index']
  #allocation1 [shape = 'u32[144,128]{1,0:T(1,128)}', space=vmem, size = 0x12000, scoped, tag = 'internal scratch']
  %s0 = inlined_call_operand.hbm [shape: f32[8,128], index: 0, kind: input, shape index: {}]
  %s1 = inlined_call_operand.hbm [shape: f32[8,128], index: 1, kind: output, shape index: {}]
  %s2 = sld [smem:[#allocation0]]
  $region18: #{tpu_custom_call.1} parent=0
    _
  %s4 = ssub.s32 1, %s2
  %s5 = scalar_select 0, %s4, %s2
  $region1: #{tpu_custom_call.1} parent=0
    #allocation2 [shape = 'u8[4096]{0}', space=vmem, size = 0x1000, scoped, tag = 'input window, operand 0, single buffered']
    #allocation3 [shape = 's32[1]{0}', space=sflag, size = 0x4, scoped, tag = 'scoped memory for tpu_custom_call.1']
    #allocation4 [shape = 's32[1]{0}', space=sflag, size = 0x4, scoped, tag = 'scoped memory for tpu_custom_call.1']
    #allocation5 [shape = 'u8[4096]{0}', space=vmem, size = 0x1000, scoped, tag = 'output window, operand 0, single buffered']
    %6 = vsyncpa [#allocation3], 0
    %7 = vsyncpa [#allocation4], 0
    // Predicated region
    $region2: #{tpu_custom_call.1} parent=1 // pred_check
      _
    $region3: #{tpu_custom_call.1} parent=1 // pred_check_branch
      %9 = sbr.rel (0) target = $region5
    $region4: #{tpu_custom_call.1} parent=1 // pred_region
      %s11 = ssub.s32 128, 128
      %12 = vsyncadd [#allocation3], %s11
      %s14 = sshll.u32 [#allocation2], 4
      %s15 = int_to_ptr.vmem [resolvable:$true] %s14
      %17 = dma.hbm_to_vmem [thread:$0]  %s0, 128, %s15, [#allocation3]
    $region5: #{tpu_custom_call.1} parent=1 // pred_fallthru
      _
    // Predicated region
    $region6: #{tpu_custom_call.1} parent=1 // pred_check
      _
    $region7: #{tpu_custom_call.1} parent=1 // pred_check_branch
      %19 = sbr.rel (0) target = $region9
    $region8: #{tpu_custom_call.1} parent=1 // pred_region
      %20 = dma.done [#allocation3], 128
    $region9: #{tpu_custom_call.1} parent=1 // pred_fallthru
      _
    %v21 = vld [vmem:[#allocation2] sm:$0xff]
    %22 = vrot.lane.b32.xlu0 %v21, 1
    %v23 = vpop.permute.xlu0 %22
    %24 = vst [vmem:[#allocation5] sm:$0xff] %v23
    // Predicated region
    $region10: #{tpu_custom_call.1} parent=1 // pred_check
      _
    $region11: #{tpu_custom_call.1} parent=1 // pred_check_branch
      %26 = sbr.rel (0) target = $region13
    $region12: #{tpu_custom_call.1} parent=1 // pred_region
      %s28 = ssub.s32 128, 128
      %29 = vsyncadd [#allocation4], %s28
      %s31 = sshll.u32 [#allocation5], 4
      %s32 = int_to_ptr.vmem [resolvable:$true] %s31
      %34 = dma.vmem_to_hbm [thread:$0]  %s32, 128, %s1, [#allocation4]
    $region13: #{tpu_custom_call.1} parent=1 // pred_fallthru
      _
    // Predicated region
    $region14: #{tpu_custom_call.1} parent=1 // pred_check
      _
    $region15: #{tpu_custom_call.1} parent=1 // pred_check_branch
      %36 = sbr.rel (0) target = $region17
    $region16: #{tpu_custom_call.1} parent=1 // pred_region
      %37 = dma.done [#allocation4], 128
    $region17: #{tpu_custom_call.1} parent=1 // pred_fallthru
      _
    %38 = vsyncpa [#allocation3], 1
    %39 = vsyncpa [#allocation4], 1

</llo_original>
